<compile_context>
chip_gen: v7x
topology: tpu7x:2x2x1
jax: 0.10.0
libtpu: 0.0.40
codegen_flags: <defaults>
</compile_context>

<pallas_src>
import jax
import jax.numpy as jnp
from jax.experimental import pallas as pl
from jax.experimental.pallas import tpu as pltpu

IN_DIM = 768
HID_DIM = 200
OUT_DIM = 15

HID_PAD = 256   # 200 -> 256 (lane aligned)
OUT_PAD = 128   # 15  -> 128 (dense, unmasked stores)


def _dropout_keep_mask(shape, row_offset, seed_u32):
    """Bernoulli(0.5) keep-mask from a cheap integer hash of (row, col, seed).

    Pure jnp integer ops -> works on TPU (Mosaic) and in interpret mode; the
    global row index already mixes the grid position into the stream.
    """
    row = jax.lax.broadcasted_iota(jnp.int32, shape, 0).astype(jnp.uint32)
    col = jax.lax.broadcasted_iota(jnp.int32, shape, 1).astype(jnp.uint32)
    z = (row + row_offset.astype(jnp.uint32)) * jnp.uint32(0x9E3779B1)
    z = z + col * jnp.uint32(0x85EBCA6B)
    z = z + seed_u32
    # murmur-style finalizer
    z = z ^ (z >> 16)
    z = z * jnp.uint32(0x7FEB352D)
    z = z ^ (z >> 15)
    z = z * jnp.uint32(0x846CA68B)
    z = z ^ (z >> 16)
    return (z & jnp.uint32(1)) == 0


def net_kernel(seed_ref, x_ref, w1_ref, b1_ref, w2_ref, b2_ref, o_ref):
    tm = x_ref.shape[0]

    # Hidden layer: x @ W1 + b1, ReLU.
    # bf16 MXU operands, f32 accumulate (elementwise stays f32).
    h = jnp.dot(
        x_ref[...].astype(jnp.bfloat16),
        w1_ref[...].astype(jnp.bfloat16),
        preferred_element_type=jnp.float32,
    )
    h = jnp.maximum(h + b1_ref[...], 0.0)            # (TM, HID_PAD) f32

    # Classifier: h @ W2 + b2 (tiny matmul, keep f32 operands).
    o = jnp.dot(h, w2_ref[...], preferred_element_type=jnp.float32)
    o = o + b2_ref[...]                               # (TM, OUT_PAD) f32

    # Dropout p=0.5 (F.dropout default training=True): keep w.p. 0.5, scale by 2.
    row_offset = jnp.int32(pl.program_id(0) * tm)
    keep = _dropout_keep_mask(o.shape, row_offset, seed_ref[0].astype(jnp.uint32))
    o_ref[...] = jnp.where(keep, o * 2.0, 0.0).astype(o_ref.dtype)


def net_forward(x, w1, b1, w2, b2, seed, *, tm=1024):
    """x: (B, 768) f32; w1: (768, 200); b1: (200,); w2: (200, 15); b2: (15,);
    seed: (1,) int32. Returns (B, 15) f32."""
    B = x.shape[0]
    tm = min(tm, B)                       # full-extent tile for small batches
    grid = (pl.cdiv(B, tm),)

    # Zero-pad params to lane-aligned shapes (zeros are inert through ReLU/matmul).
    w1p = jnp.pad(w1.astype(jnp.float32), ((0, 0), (0, HID_PAD - HID_DIM)))
    b1p = jnp.pad(b1.astype(jnp.float32).reshape(1, -1),
                  ((0, 0), (0, HID_PAD - HID_DIM)))
    w2p = jnp.pad(w2.astype(jnp.float32),
                  ((0, HID_PAD - HID_DIM), (0, OUT_PAD - OUT_DIM)))
    b2p = jnp.pad(b2.astype(jnp.float32).reshape(1, -1),
                  ((0, 0), (0, OUT_PAD - OUT_DIM)))
    seed = jnp.asarray(seed, dtype=jnp.int32).reshape(1)

    out_padded = pl.pallas_call(
        net_kernel,
        out_shape=jax.ShapeDtypeStruct((B, OUT_PAD), jnp.float32),
        grid_spec=pltpu.PrefetchScalarGridSpec(
            num_scalar_prefetch=1,                     # seed -> SMEM
            grid=grid,
            in_specs=[
                pl.BlockSpec((tm, IN_DIM), lambda i, s: (i, 0)),       # x tile
                pl.BlockSpec((IN_DIM, HID_PAD), lambda i, s: (0, 0)),  # w1 (resident)
                pl.BlockSpec((1, HID_PAD), lambda i, s: (0, 0)),       # b1 (resident)
                pl.BlockSpec((HID_PAD, OUT_PAD), lambda i, s: (0, 0)), # w2 (resident)
                pl.BlockSpec((1, OUT_PAD), lambda i, s: (0, 0)),       # b2 (resident)
            ],
            out_specs=pl.BlockSpec((tm, OUT_PAD), lambda i, s: (i, 0)),
        ),
        compiler_params=pltpu.CompilerParams(
            dimension_semantics=("parallel",),
            vmem_limit_bytes=32 * 1024 * 1024,
        ),
    )(seed, x, w1p, b1p, w2p, b2p)

    return out_padded[:, :OUT_DIM]


def init_params(key):
    """Deterministic init mimicking nn.Linear's uniform(-1/sqrt(fan_in), 1/sqrt(fan_in))."""
    k1, k2, k3, k4 = jax.random.split(key, 4)
    bound1 = 1.0 / jnp.sqrt(IN_DIM)
    bound2 = 1.0 / jnp.sqrt(HID_DIM)
    w1 = jax.random.uniform(k1, (IN_DIM, HID_DIM), jnp.float32, -bound1, bound1)
    b1 = jax.random.uniform(k2, (HID_DIM,), jnp.float32, -bound1, bound1)
    w2 = jax.random.uniform(k3, (HID_DIM, OUT_DIM), jnp.float32, -bound2, bound2)
    b2 = jax.random.uniform(k4, (OUT_DIM,), jnp.float32, -bound2, bound2)
    return w1, b1, w2, b2


if __name__ == "__main__":
    key = jax.random.PRNGKey(0)
    k_x, k_p = jax.random.split(key)

    B = 8
    x = jax.random.normal(k_x, (B, IN_DIM), jnp.float32)
    w1, b1, w2, b2 = init_params(k_p)
    seed = jnp.array([42], dtype=jnp.int32)

    out = net_forward(x, w1, b1, w2, b2, seed)
    out = jax.block_until_ready(out)

    assert out.shape == (B, OUT_DIM)
    assert out.dtype == jnp.float32
    assert bool(jnp.all(jnp.isfinite(out)))
    print("KERNEL_OK")
</pallas_src>

<mosaic_0001>
module attributes {stable_mosaic.version = 11 : i64} {
  func.func @net_kernel(%arg0: i32, %arg1: memref<1xi32, #tpu.memory_space<smem>>, %arg2: memref<8x768xf32, #tpu.memory_space<vmem>>, %arg3: memref<768x256xf32, #tpu.memory_space<vmem>>, %arg4: memref<1x256xf32, #tpu.memory_space<vmem>>, %arg5: memref<256x128xf32, #tpu.memory_space<vmem>>, %arg6: memref<1x128xf32, #tpu.memory_space<vmem>>, %arg7: memref<8x128xf32, #tpu.memory_space<vmem>>) attributes {dimension_semantics = [#tpu.dimension_semantics<parallel>], iteration_bounds = array<i64: 1>, scalar_prefetch = 1 : i64, scratch_operands = 0 : i64, tpu.core_type = #tpu.core_type<tc>, window_params = [{transform_indices = @transform_0, window_bounds = array<i64: 8, 768>}, {pipeline_mode = #tpu.pipeline_mode<synchronous>, transform_indices = @transform_1, window_bounds = array<i64: 768, 256>}, {pipeline_mode = #tpu.pipeline_mode<synchronous>, transform_indices = @transform_2, window_bounds = array<i64: 1, 256>}, {pipeline_mode = #tpu.pipeline_mode<synchronous>, transform_indices = @transform_3, window_bounds = array<i64: 256, 128>}, {pipeline_mode = #tpu.pipeline_mode<synchronous>, transform_indices = @transform_4, window_bounds = array<i64: 1, 128>}, {transform_indices = @transform_5, window_bounds = array<i64: 8, 128>}]} {
    %c0 = arith.constant 0 : index
    %c0_0 = arith.constant 0 : index
    %0 = vector.load %arg2[%c0, %c0_0] : memref<8x768xf32, #tpu.memory_space<vmem>>, vector<8x768xf32>
    %1 = arith.truncf %0 : vector<8x768xf32> to vector<8x768xbf16>
    %c0_1 = arith.constant 0 : index
    %c0_2 = arith.constant 0 : index
    %2 = vector.load %arg3[%c0_1, %c0_2] : memref<768x256xf32, #tpu.memory_space<vmem>>, vector<768x256xf32>
    %3 = arith.truncf %2 : vector<768x256xf32> to vector<768x256xbf16>
    %cst = arith.constant dense<0.000000e+00> : vector<8x256xf32>
    %4 = tpu.matmul %1, %3, %cst {dimension_numbers = #tpu.dot_dimension_numbers<[1], [0], [0], [1], [0, 0, 1, 1], [], []>} : vector<8x768xbf16>, vector<768x256xbf16>, vector<8x256xf32> -> vector<8x256xf32>
    %c0_3 = arith.constant 0 : index
    %c0_4 = arith.constant 0 : index
    %5 = vector.load %arg4[%c0_3, %c0_4] : memref<1x256xf32, #tpu.memory_space<vmem>>, vector<1x256xf32>
    %6 = vector.broadcast %5 : vector<1x256xf32> to vector<8x256xf32>
    %7 = arith.addf %4, %6 : vector<8x256xf32>
    %cst_5 = arith.constant 0.000000e+00 : f32
    %8 = vector.broadcast %cst_5 : f32 to vector<8x256xf32>
    %9 = arith.maximumf %7, %8 : vector<8x256xf32>
    %c0_6 = arith.constant 0 : index
    %c0_7 = arith.constant 0 : index
    %10 = vector.load %arg5[%c0_6, %c0_7] : memref<256x128xf32, #tpu.memory_space<vmem>>, vector<256x128xf32>
    %cst_8 = arith.constant dense<0.000000e+00> : vector<8x128xf32>
    %11 = tpu.matmul %9, %10, %cst_8 {dimension_numbers = #tpu.dot_dimension_numbers<[1], [0], [0], [1], [0, 0, 1, 1], [], []>} : vector<8x256xf32>, vector<256x128xf32>, vector<8x128xf32> -> vector<8x128xf32>
    %c0_9 = arith.constant 0 : index
    %c0_10 = arith.constant 0 : index
    %12 = vector.load %arg6[%c0_9, %c0_10] : memref<1x128xf32, #tpu.memory_space<vmem>>, vector<1x128xf32>
    %13 = vector.broadcast %12 : vector<1x128xf32> to vector<8x128xf32>
    %14 = arith.addf %11, %13 : vector<8x128xf32>
    %c8_i32 = arith.constant 8 : i32
    %15 = arith.muli %arg0, %c8_i32 : i32
    %c0_11 = arith.constant 0 : index
    %16 = memref.load %arg1[%c0_11] : memref<1xi32, #tpu.memory_space<smem>>
    %17 = tpu.iota {dimensions = array<i32: 0>} : vector<8x128xi32>
    %18 = tpu.iota {dimensions = array<i32: 1>} : vector<8x128xi32>
    %19 = vector.broadcast %15 : i32 to vector<8x128xi32>
    %20 = arith.addi %17, %19 : vector<8x128xi32>
    %c-1640531535_i32 = arith.constant -1640531535 : i32
    %21 = vector.broadcast %c-1640531535_i32 : i32 to vector<8x128xi32>
    %22 = arith.muli %20, %21 : vector<8x128xi32>
    %c-2048144789_i32 = arith.constant -2048144789 : i32
    %23 = vector.broadcast %c-2048144789_i32 : i32 to vector<8x128xi32>
    %24 = arith.muli %18, %23 : vector<8x128xi32>
    %25 = arith.addi %22, %24 : vector<8x128xi32>
    %26 = vector.broadcast %16 : i32 to vector<8x128xi32>
    %27 = arith.addi %25, %26 : vector<8x128xi32>
    %c16_i32 = arith.constant 16 : i32
    %28 = vector.broadcast %c16_i32 : i32 to vector<8x128xi32>
    %29 = arith.shrui %27, %28 : vector<8x128xi32>
    %30 = arith.xori %27, %29 : vector<8x128xi32>
    %c2146121005_i32 = arith.constant 2146121005 : i32
    %31 = vector.broadcast %c2146121005_i32 : i32 to vector<8x128xi32>
    %32 = arith.muli %30, %31 : vector<8x128xi32>
    %c15_i32 = arith.constant 15 : i32
    %33 = vector.broadcast %c15_i32 : i32 to vector<8x128xi32>
    %34 = arith.shrui %32, %33 : vector<8x128xi32>
    %35 = arith.xori %32, %34 : vector<8x128xi32>
    %c-2073254261_i32 = arith.constant -2073254261 : i32
    %36 = vector.broadcast %c-2073254261_i32 : i32 to vector<8x128xi32>
    %37 = arith.muli %35, %36 : vector<8x128xi32>
    %c16_i32_12 = arith.constant 16 : i32
    %38 = vector.broadcast %c16_i32_12 : i32 to vector<8x128xi32>
    %39 = arith.shrui %37, %38 : vector<8x128xi32>
    %40 = arith.xori %37, %39 : vector<8x128xi32>
    %c1_i32 = arith.constant 1 : i32
    %41 = vector.broadcast %c1_i32 : i32 to vector<8x128xi32>
    %42 = arith.andi %40, %41 : vector<8x128xi32>
    %c0_i32 = arith.constant 0 : i32
    %43 = vector.broadcast %c0_i32 : i32 to vector<8x128xi32>
    %44 = arith.cmpi eq, %42, %43 : vector<8x128xi32>
    %cst_13 = arith.constant 2.000000e+00 : f32
    %45 = vector.broadcast %cst_13 : f32 to vector<8x128xf32>
    %46 = arith.mulf %14, %45 : vector<8x128xf32>
    %cst_14 = arith.constant 0.000000e+00 : f32
    %47 = vector.broadcast %cst_14 : f32 to vector<8x128xf32>
    %48 = arith.select %44, %46, %47 : vector<8x128xi1>, vector<8x128xf32>
    %c0_15 = arith.constant 0 : index
    %c0_16 = arith.constant 0 : index
    %49 = vector.load %arg7[%c0_15, %c0_16] : memref<8x128xf32, #tpu.memory_space<vmem>>, vector<8x128xf32>
    tpu.vector_store %arg7[%c0_15, %c0_16], %48 {strides = array<i32>} : memref<8x128xf32, #tpu.memory_space<vmem>>, vector<8x128xf32>,
    return
  }
  func.func @transform_0(%arg0: i32, %arg1: memref<1xi32, #tpu.memory_space<smem>>) -> (i32, i32) {
    %c0_i32 = arith.constant 0 : i32
    %c0_i32_0 = arith.constant 0 : i32
    return %arg0, %c0_i32 : i32, i32
  }
  func.func @transform_1(%arg0: i32, %arg1: memref<1xi32, #tpu.memory_space<smem>>) -> (i32, i32) {
    %c0_i32 = arith.constant 0 : i32
    %c0_i32_0 = arith.constant 0 : i32
    %c0_i32_1 = arith.constant 0 : i32
    return %c0_i32, %c0_i32_0 : i32, i32
  }
  func.func @transform_2(%arg0: i32, %arg1: memref<1xi32, #tpu.memory_space<smem>>) -> (i32, i32) {
    %c0_i32 = arith.constant 0 : i32
    %c0_i32_0 = arith.constant 0 : i32
    %c0_i32_1 = arith.constant 0 : i32
    return %c0_i32, %c0_i32_0 : i32, i32
  }
  func.func @transform_3(%arg0: i32, %arg1: memref<1xi32, #tpu.memory_space<smem>>) -> (i32, i32) {
    %c0_i32 = arith.constant 0 : i32
    %c0_i32_0 = arith.constant 0 : i32
    %c0_i32_1 = arith.constant 0 : i32
    return %c0_i32, %c0_i32_0 : i32, i32
  }
  func.func @transform_4(%arg0: i32, %arg1: memref<1xi32, #tpu.memory_space<smem>>) -> (i32, i32) {
    %c0_i32 = arith.constant 0 : i32
    %c0_i32_0 = arith.constant 0 : i32
    %c0_i32_1 = arith.constant 0 : i32
    return %c0_i32, %c0_i32_0 : i32, i32
  }
  func.func @transform_5(%arg0: i32, %arg1: memref<1xi32, #tpu.memory_space<smem>>) -> (i32, i32) {
    %c0_i32 = arith.constant 0 : i32
    %c0_i32_0 = arith.constant 0 : i32
    return %arg0, %c0_i32 : i32, i32
  }
}

</mosaic_0001>

<llo_original>
// kernel: tpu_custom_call.1
$region0: #{tpu_custom_call.1}
  #allocation0 [shape = 'u32[]', space=smem, size = 0x4, offset = 0x4, fixed_abs, tag = 'smem constant byte address 0x4 - core index']
  #allocation1 [shape = 'u32[144,128]{1,0:T(1,128)}', space=vmem, size = 0x12000, scoped, tag = 'internal scratch']
  #allocation2 [shape = 's32[1]{0}', space=sflag, size = 0x4, scoped, tag = 'scoped memory for tpu_custom_call.1']
  #allocation3 [shape = 's32[1]{0:T(128)S(6)}', space=smem, size = 0x200, scoped, tag = 'prefetched SMEM operand 0']
  %s0 = inlined_call_operand.<no memory space> [shape: s32[1], index: 0, kind: input, shape index: {}]
  %s1 = inlined_call_operand.hbm [shape: f32[8,768], index: 1, kind: input, shape index: {}]
  %s2 = inlined_call_operand.hbm [shape: f32[768,256], index: 2, kind: input, shape index: {}]
  %s3 = inlined_call_operand.vmem [shape: f32[1,256], index: 3, kind: input, shape index: {}]
  %s4 = inlined_call_operand.hbm [shape: f32[256,128], index: 4, kind: input, shape index: {}]
  %s5 = inlined_call_operand.vmem [shape: f32[1,128], index: 5, kind: input, shape index: {}]
  %s6 = inlined_call_operand.hbm [shape: f32[8,128], index: 6, kind: output, shape index: {}]
  %s7 = sld [smem:[#allocation0]]
  $region42: #{tpu_custom_call.1} parent=0
    _
  %s9 = ssub.s32 1, %s7
  %s10 = scalar_select 0, %s9, %s7
  %11 = sst [smem:[#allocation3]] %s0
  $region1: #{tpu_custom_call.1} parent=0
    #allocation4 [shape = 'u8[24576]{0}', space=vmem, size = 0x6000, scoped, tag = 'input window, operand 1, single buffered']
    #allocation5 [shape = 's32[1]{0}', space=sflag, size = 0x4, scoped, tag = 'scoped memory for tpu_custom_call.1']
    #allocation6 [shape = 's32[1]{0}', space=sflag, size = 0x4, scoped, tag = 'scoped memory for tpu_custom_call.1']
    #allocation7 [shape = 'u8[786432]{0}', space=vmem, size = 0xc0000, scoped, tag = 'input window, operand 2, single buffered']
    #allocation8 [shape = 's32[1]{0}', space=sflag, size = 0x4, scoped, tag = 'scoped memory for tpu_custom_call.1']
    #allocation9 [shape = 'u8[131072]{0}', space=vmem, size = 0x20000, scoped, tag = 'input window, operand 4, single buffered']
    #allocation10 [shape = 'u8[4096]{0}', space=vmem, size = 0x1000, scoped, tag = 'output window, operand 0, single buffered']
    %12 = vsyncpa [#allocation5], 0
    %13 = vsyncpa [#allocation8], 0
    %14 = vsyncpa [#allocation6], 0
    // Predicated region
    $region2: #{tpu_custom_call.1} parent=1 // pred_check
      _
    $region3: #{tpu_custom_call.1} parent=1 // pred_check_branch
      %16 = sbr.rel (0) target = $region5
    $region4: #{tpu_custom_call.1} parent=1 // pred_region
      %s18 = ssub.s32 768, 768
      %19 = vsyncadd [#allocation5], %s18
      %s21 = sshll.u32 [#allocation4], 4
      %s22 = int_to_ptr.vmem [resolvable:$true] %s21
      %24 = dma.hbm_to_vmem [thread:$0]  %s1, 768, %s22, [#allocation5]
    $region5: #{tpu_custom_call.1} parent=1 // pred_fallthru
      _
    // Predicated region
    $region6: #{tpu_custom_call.1} parent=1 // pred_check
      _
    $region7: #{tpu_custom_call.1} parent=1 // pred_check_branch
      %26 = sbr.rel (0) target = $region9
    $region8: #{tpu_custom_call.1} parent=1 // pred_region
      %s28 = ssub.s32 24576, 24576
      %29 = vsyncadd [#allocation8], %s28
      %s30 = sshll.u32 [#allocation7], 4
      %s31 = int_to_ptr.vmem [resolvable:$true] %s30
      %36 = dma.hbm_to_vmem [thread:$0]  %s2, 24576, %s31, [#allocation8], 256, 256, 16
    $region9: #{tpu_custom_call.1} parent=1 // pred_fallthru
      _
    // Predicated region
    $region10: #{tpu_custom_call.1} parent=1 // pred_check
      _
    $region11: #{tpu_custom_call.1} parent=1 // pred_check_branch
      %38 = sbr.rel (0) target = $region13
    $region12: #{tpu_custom_call.1} parent=1 // pred_region
      _
    $region13: #{tpu_custom_call.1} parent=1 // pred_fallthru
      _
    // Predicated region
    $region14: #{tpu_custom_call.1} parent=1 // pred_check
      _
    $region15: #{tpu_custom_call.1} parent=1 // pred_check_branch
      %40 = sbr.rel (0) target = $region17
    $region16: #{tpu_custom_call.1} parent=1 // pred_region
      %s42 = ssub.s32 4096, 4096
      %43 = vsyncadd [#allocation8], %s42
      %s44 = sshll.u32 [#allocation9], 4
      %s45 = int_to_ptr.vmem [resolvable:$true] %s44
      %50 = dma.hbm_to_vmem [thread:$0]  %s4, 4096, %s45, [#allocation8], 128, 128, 8
    $region17: #{tpu_custom_call.1} parent=1 // pred_fallthru
      _
    // Predicated region
    $region18: #{tpu_custom_call.1} parent=1 // pred_check
      _
    $region19: #{tpu_custom_call.1} parent=1 // pred_check_branch
      %52 = sbr.rel (0) target = $region21
    $region20: #{tpu_custom_call.1} parent=1 // pred_region
      _
    $region21: #{tpu_custom_call.1} parent=1 // pred_fallthru
      _
    // Predicated region
    $region22: #{tpu_custom_call.1} parent=1 // pred_check
      _
    $region23: #{tpu_custom_call.1} parent=1 // pred_check_branch
      %54 = sbr.rel (0) target = $region25
    $region24: #{tpu_custom_call.1} parent=1 // pred_region
      %55 = dma.done [#allocation5], 768
    $region25: #{tpu_custom_call.1} parent=1 // pred_fallthru
      _
    // Predicated region
    $region26: #{tpu_custom_call.1} parent=1 // pred_check
      _
    $region27: #{tpu_custom_call.1} parent=1 // pred_check_branch
      %57 = sbr.rel (0) target = $region29
    $region28: #{tpu_custom_call.1} parent=1 // pred_region
      %58 = dma.done [#allocation8], 24576
    $region29: #{tpu_custom_call.1} parent=1 // pred_fallthru
      _
    // Predicated region
    $region30: #{tpu_custom_call.1} parent=1 // pred_check
      _
    $region31: #{tpu_custom_call.1} parent=1 // pred_check_branch
      %60 = sbr.rel (0) target = $region33
    $region32: #{tpu_custom_call.1} parent=1 // pred_region
      %61 = dma.done [#allocation8], 4096
    $region33: #{tpu_custom_call.1} parent=1 // pred_fallthru
      _
    %v62 = vld [vmem:[#allocation4] sm:$0xff]
    %v63 = vld [vmem:[#allocation4 + $0x8] sm:$0xff]
    %v64 = vld [vmem:[#allocation4 + $0x10] sm:$0xff]
    %v65 = vld [vmem:[#allocation4 + $0x18] sm:$0xff]
    %v66 = vld [vmem:[#allocation4 + $0x20] sm:$0xff]
    %v67 = vld [vmem:[#allocation4 + $0x28] sm:$0xff]
    %v68 = vpack.c.bf16 %v62, %v62
    %v69 = vpack.c.bf16 %v63, %v63
    %v70 = vpack.c.bf16 %v64, %v64
    %v71 = vpack.c.bf16 %v65, %v65
    %v72 = vpack.c.bf16 %v66, %v66
    %v73 = vpack.c.bf16 %v67, %v67
    %v74 = vld [vmem:[#allocation7] sm:$0xff]
    %v75 = vld [vmem:[#allocation7 + $0x8] sm:$0xff]
    %v76 = vld [vmem:[#allocation7 + $0x10] sm:$0xff]
    %v77 = vld [vmem:[#allocation7 + $0x18] sm:$0xff]
    %v78 = vld [vmem:[#allocation7 + $0x20] sm:$0xff]
    %v79 = vld [vmem:[#allocation7 + $0x28] sm:$0xff]
    %v80 = vld [vmem:[#allocation7 + $0x30] sm:$0xff]
    %v81 = vld [vmem:[#allocation7 + $0x38] sm:$0xff]
    %v82 = vld [vmem:[#allocation7 + $0x40] sm:$0xff]
    %v83 = vld [vmem:[#allocation7 + $0x48] sm:$0xff]
    %v84 = vld [vmem:[#allocation7 + $0x50] sm:$0xff]
    %v85 = vld [vmem:[#allocation7 + $0x58] sm:$0xff]
    %v86 = vld [vmem:[#allocation7 + $0x60] sm:$0xff]
    %v87 = vld [vmem:[#allocation7 + $0x68] sm:$0xff]
    %v88 = vld [vmem:[#allocation7 + $0x70] sm:$0xff]
    %v89 = vld [vmem:[#allocation7 + $0x78] sm:$0xff]
    %v90 = vld [vmem:[#allocation7 + $0x80] sm:$0xff]
    %v91 = vld [vmem:[#allocation7 + $0x88] sm:$0xff]
    %v92 = vld [vmem:[#allocation7 + $0x90] sm:$0xff]
    %v93 = vld [vmem:[#allocation7 + $0x98] sm:$0xff]
    %v94 = vld [vmem:[#allocation7 + $0xa0] sm:$0xff]
    %v95 = vld [vmem:[#allocation7 + $0xa8] sm:$0xff]
    %v96 = vld [vmem:[#allocation7 + $0xb0] sm:$0xff]
    %v97 = vld [vmem:[#allocation7 + $0xb8] sm:$0xff]
    %v98 = vld [vmem:[#allocation7 + $0xc0] sm:$0xff]
    %v99 = vld [vmem:[#allocation7 + $0xc8] sm:$0xff]
    %v100 = vld [vmem:[#allocation7 + $0xd0] sm:$0xff]
    %v101 = vld [vmem:[#allocation7 + $0xd8] sm:$0xff]
    %v102 = vld [vmem:[#allocation7 + $0xe0] sm:$0xff]
    %v103 = vld [vmem:[#allocation7 + $0xe8] sm:$0xff]
    %v104 = vld [vmem:[#allocation7 + $0xf0] sm:$0xff]
    %v105 = vld [vmem:[#allocation7 + $0xf8] sm:$0xff]
    %v106 = vld [vmem:[#allocation7 + $0x100] sm:$0xff]
    %v107 = vld [vmem:[#allocation7 + $0x108] sm:$0xff]
    %v108 = vld [vmem:[#allocation7 + $0x110] sm:$0xff]
    %v109 = vld [vmem:[#allocation7 + $0x118] sm:$0xff]
    %v110 = vld [vmem:[#allocation7 + $0x120] sm:$0xff]
    %v111 = vld [vmem:[#allocation7 + $0x128] sm:$0xff]
    %v112 = vld [vmem:[#allocation7 + $0x130] sm:$0xff]
    %v113 = vld [vmem:[#allocation7 + $0x138] sm:$0xff]
    %v114 = vld [vmem:[#allocation7 + $0x140] sm:$0xff]
    %v115 = vld [vmem:[#allocation7 + $0x148] sm:$0xff]
    %v116 = vld [vmem:[#allocation7 + $0x150] sm:$0xff]
    %v117 = vld [vmem:[#allocation7 + $0x158] sm:$0xff]
    %v118 = vld [vmem:[#allocation7 + $0x160] sm:$0xff]
    %v119 = vld [vmem:[#allocation7 + $0x168] sm:$0xff]
    %v120 = vld [vmem:[#allocation7 + $0x170] sm:$0xff]
    %v121 = vld [vmem:[#allocation7 + $0x178] sm:$0xff]
    %v122 = vld [vmem:[#allocation7 + $0x180] sm:$0xff]
    %v123 = vld [vmem:[#allocation7 + $0x188] sm:$0xff]
    %v124 = vld [vmem:[#allocation7 + $0x190] sm:$0xff]
    %v125 = vld [vmem:[#allocation7 + $0x198] sm:$0xff]
    %v126 = vld [vmem:[#allocation7 + $0x1a0] sm:$0xff]
    %v127 = vld [vmem:[#allocation7 + $0x1a8] sm:$0xff]
    %v128 = vld [vmem:[#allocation7 + $0x1b0] sm:$0xff]
    %v129 = vld [vmem:[#allocation7 + $0x1b8] sm:$0xff]
    %v130 = vld [vmem:[#allocation7 + $0x1c0] sm:$0xff]
    %v131 = vld [vmem:[#allocation7 + $0x1c8] sm:$0xff]
    %v132 = vld [vmem:[#allocation7 + $0x1d0] sm:$0xff]
    %v133 = vld [vmem:[#allocation7 + $0x1d8] sm:$0xff]
    %v134 = vld [vmem:[#allocation7 + $0x1e0] sm:$0xff]
    %v135 = vld [vmem:[#allocation7 + $0x1e8] sm:$0xff]
    %v136 = vld [vmem:[#allocation7 + $0x1f0] sm:$0xff]
    %v137 = vld [vmem:[#allocation7 + $0x1f8] sm:$0xff]
    %v138 = vld [vmem:[#allocation7 + $0x200] sm:$0xff]
    %v139 = vld [vmem:[#allocation7 + $0x208] sm:$0xff]
    %v140 = vld [vmem:[#allocation7 + $0x210] sm:$0xff]
    %v141 = vld [vmem:[#allocation7 + $0x218] sm:$0xff]
    %v142 = vld [vmem:[#allocation7 + $0x220] sm:$0xff]
    %v143 = vld [vmem:[#allocation7 + $0x228] sm:$0xff]
    %v144 = vld [vmem:[#allocation7 + $0x230] sm:$0xff]
    %v145 = vld [vmem:[#allocation7 + $0x238] sm:$0xff]
    %v146 = vld [vmem:[#allocation7 + $0x240] sm:$0xff]
    %v147 = vld [vmem:[#allocation7 + $0x248] sm:$0xff]
    %v148 = vld [vmem:[#allocation7 + $0x250] sm:$0xff]
    %v149 = vld [vmem:[#allocation7 + $0x258] sm:$0xff]
    %v150 = vld [vmem:[#allocation7 + $0x260] sm:$0xff]
    %v151 = vld [vmem:[#allocation7 + $0x268] sm:$0xff]
    %v152 = vld [vmem:[#allocation7 + $0x270] sm:$0xff]
    %v153 = vld [vmem:[#allocation7 + $0x278] sm:$0xff]
    %v154 = vld [vmem:[#allocation7 + $0x280] sm:$0xff]
    %v155 = vld [vmem:[#allocation7 + $0x288] sm:$0xff]
    %v156 = vld [vmem:[#allocation7 + $0x290] sm:$0xff]
    %v157 = vld [vmem:[#allocation7 + $0x298] sm:$0xff]
    %v158 = vld [vmem:[#allocation7 + $0x2a0] sm:$0xff]
    %v159 = vld [vmem:[#allocation7 + $0x2a8] sm:$0xff]
    %v160 = vld [vmem:[#allocation7 + $0x2b0] sm:$0xff]
    %v161 = vld [vmem:[#allocation7 + $0x2b8] sm:$0xff]
    %v162 = vld [vmem:[#allocation7 + $0x2c0] sm:$0xff]
    %v163 = vld [vmem:[#allocation7 + $0x2c8] sm:$0xff]
    %v164 = vld [vmem:[#allocation7 + $0x2d0] sm:$0xff]
    %v165 = vld [vmem:[#allocation7 + $0x2d8] sm:$0xff]
    %v166 = vld [vmem:[#allocation7 + $0x2e0] sm:$0xff]
    %v167 = vld [vmem:[#allocation7 + $0x2e8] sm:$0xff]
    %v168 = vld [vmem:[#allocation7 + $0x2f0] sm:$0xff]
    %v169 = vld [vmem:[#allocation7 + $0x2f8] sm:$0xff]
    %v170 = vld [vmem:[#allocation7 + $0x300] sm:$0xff]
    %v171 = vld [vmem:[#allocation7 + $0x308] sm:$0xff]
    %v172 = vld [vmem:[#allocation7 + $0x310] sm:$0xff]
    %v173 = vld [vmem:[#allocation7 + $0x318] sm:$0xff]
    %v174 = vld [vmem:[#allocation7 + $0x320] sm:$0xff]
    %v175 = vld [vmem:[#allocation7 + $0x328] sm:$0xff]
    %v176 = vld [vmem:[#allocation7 + $0x330] sm:$0xff]
    %v177 = vld [vmem:[#allocation7 + $0x338] sm:$0xff]
    %v178 = vld [vmem:[#allocation7 + $0x340] sm:$0xff]
    %v179 = vld [vmem:[#allocation7 + $0x348] sm:$0xff]
    %v180 = vld [vmem:[#allocation7 + $0x350] sm:$0xff]
    %v181 = vld [vmem:[#allocation7 + $0x358] sm:$0xff]
    %v182 = vld [vmem:[#allocation7 + $0x360] sm:$0xff]
    %v183 = vld [vmem:[#allocation7 + $0x368] sm:$0xff]
    %v184 = vld [vmem:[#allocation7 + $0x370] sm:$0xff]
    %v185 = vld [vmem:[#allocation7 + $0x378] sm:$0xff]
    %v186 = vld [vmem:[#allocation7 + $0x380] sm:$0xff]
    %v187 = vld [vmem:[#allocation7 + $0x388] sm:$0xff]
    %v188 = vld [vmem:[#allocation7 + $0x390] sm:$0xff]
    %v189 = vld [vmem:[#allocation7 + $0x398] sm:$0xff]
    %v190 = vld [vmem:[#allocation7 + $0x3a0] sm:$0xff]
    %v191 = vld [vmem:[#allocation7 + $0x3a8] sm:$0xff]
    %v192 = vld [vmem:[#allocation7 + $0x3b0] sm:$0xff]
    %v193 = vld [vmem:[#allocation7 + $0x3b8] sm:$0xff]
    %v194 = vld [vmem:[#allocation7 + $0x3c0] sm:$0xff]
    %v195 = vld [vmem:[#allocation7 + $0x3c8] sm:$0xff]
    %v196 = vld [vmem:[#allocation7 + $0x3d0] sm:$0xff]
    %v197 = vld [vmem:[#allocation7 + $0x3d8] sm:$0xff]
    %v198 = vld [vmem:[#allocation7 + $0x3e0] sm:$0xff]
    %v199 = vld [vmem:[#allocation7 + $0x3e8] sm:$0xff]
    %v200 = vld [vmem:[#allocation7 + $0x3f0] sm:$0xff]
    %v201 = vld [vmem:[#allocation7 + $0x3f8] sm:$0xff]
    %v202 = vld [vmem:[#allocation7 + $0x400] sm:$0xff]
    %v203 = vld [vmem:[#allocation7 + $0x408] sm:$0xff]
    %v204 = vld [vmem:[#allocation7 + $0x410] sm:$0xff]
    %v205 = vld [vmem:[#allocation7 + $0x418] sm:$0xff]
    %v206 = vld [vmem:[#allocation7 + $0x420] sm:$0xff]
    %v207 = vld [vmem:[#allocation7 + $0x428] sm:$0xff]
    %v208 = vld [vmem:[#allocation7 + $0x430] sm:$0xff]
    %v209 = vld [vmem:[#allocation7 + $0x438] sm:$0xff]
    %v210 = vld [vmem:[#allocation7 + $0x440] sm:$0xff]
    %v211 = vld [vmem:[#allocation7 + $0x448] sm:$0xff]
    %v212 = vld [vmem:[#allocation7 + $0x450] sm:$0xff]
    %v213 = vld [vmem:[#allocation7 + $0x458] sm:$0xff]
    %v214 = vld [vmem:[#allocation7 + $0x460] sm:$0xff]
    %v215 = vld [vmem:[#allocation7 + $0x468] sm:$0xff]
    %v216 = vld [vmem:[#allocation7 + $0x470] sm:$0xff]
    %v217 = vld [vmem:[#allocation7 + $0x478] sm:$0xff]
    %v218 = vld [vmem:[#allocation7 + $0x480] sm:$0xff]
    %v219 = vld [vmem:[#allocation7 + $0x488] sm:$0xff]
    %v220 = vld [vmem:[#allocation7 + $0x490] sm:$0xff]
    %v221 = vld [vmem:[#allocation7 + $0x498] sm:$0xff]
    %v222 = vld [vmem:[#allocation7 + $0x4a0] sm:$0xff]
    %v223 = vld [vmem:[#allocation7 + $0x4a8] sm:$0xff]
    %v224 = vld [vmem:[#allocation7 + $0x4b0] sm:$0xff]
    %v225 = vld [vmem:[#allocation7 + $0x4b8] sm:$0xff]
    %v226 = vld [vmem:[#allocation7 + $0x4c0] sm:$0xff]
    %v227 = vld [vmem:[#allocation7 + $0x4c8] sm:$0xff]
    %v228 = vld [vmem:[#allocation7 + $0x4d0] sm:$0xff]
    %v229 = vld [vmem:[#allocation7 + $0x4d8] sm:$0xff]
    %v230 = vld [vmem:[#allocation7 + $0x4e0] sm:$0xff]
    %v231 = vld [vmem:[#allocation7 + $0x4e8] sm:$0xff]
    %v232 = vld [vmem:[#allocation7 + $0x4f0] sm:$0xff]
    %v233 = vld [vmem:[#allocation7 + $0x4f8] sm:$0xff]
    %v234 = vld [vmem:[#allocation7 + $0x500] sm:$0xff]
    %v235 = vld [vmem:[#allocation7 + $0x508] sm:$0xff]
    %v236 = vld [vmem:[#allocation7 + $0x510] sm:$0xff]
    %v237 = vld [vmem:[#allocation7 + $0x518] sm:$0xff]
    %v238 = vld [vmem:[#allocation7 + $0x520] sm:$0xff]
    %v239 = vld [vmem:[#allocation7 + $0x528] sm:$0xff]
    %v240 = vld [vmem:[#allocation7 + $0x530] sm:$0xff]
    %v241 = vld [vmem:[#allocation7 + $0x538] sm:$0xff]
    %v242 = vld [vmem:[#allocation7 + $0x540] sm:$0xff]
    %v243 = vld [vmem:[#allocation7 + $0x548] sm:$0xff]
    %v244 = vld [vmem:[#allocation7 + $0x550] sm:$0xff]
    %v245 = vld [vmem:[#allocation7 + $0x558] sm:$0xff]
    %v246 = vld [vmem:[#allocation7 + $0x560] sm:$0xff]
    %v247 = vld [vmem:[#allocation7 + $0x568] sm:$0xff]
    %v248 = vld [vmem:[#allocation7 + $0x570] sm:$0xff]
    %v249 = vld [vmem:[#allocation7 + $0x578] sm:$0xff]
    %v250 = vld [vmem:[#allocation7 + $0x580] sm:$0xff]
    %v251 = vld [vmem:[#allocation7 + $0x588] sm:$0xff]
    %v252 = vld [vmem:[#allocation7 + $0x590] sm:$0xff]
    %v253 = vld [vmem:[#allocation7 + $0x598] sm:$0xff]
    %v254 = vld [vmem:[#allocation7 + $0x5a0] sm:$0xff]
    %v255 = vld [vmem:[#allocation7 + $0x5a8] sm:$0xff]
    %v256 = vld [vmem:[#allocation7 + $0x5b0] sm:$0xff]
    %v257 = vld [vmem:[#allocation7 + $0x5b8] sm:$0xff]
    %v258 = vld [vmem:[#allocation7 + $0x5c0] sm:$0xff]
    %v259 = vld [vmem:[#allocation7 + $0x5c8] sm:$0xff]
    %v260 = vld [vmem:[#allocation7 + $0x5d0] sm:$0xff]
    %v261 = vld [vmem:[#allocation7 + $0x5d8] sm:$0xff]
    %v262 = vld [vmem:[#allocation7 + $0x5e0] sm:$0xff]
    %v263 = vld [vmem:[#allocation7 + $0x5e8] sm:$0xff]
    %v264 = vld [vmem:[#allocation7 + $0x5f0] sm:$0xff]
    %v265 = vld [vmem:[#allocation7 + $0x5f8] sm:$0xff]
    %v266 = vpack.c.bf16 %v76, %v74
    %v267 = vpack.c.bf16 %v77, %v75
    %v268 = vpack.c.bf16 %v80, %v78
    %v269 = vpack.c.bf16 %v81, %v79
    %v270 = vpack.c.bf16 %v84, %v82
    %v271 = vpack.c.bf16 %v85, %v83
    %v272 = vpack.c.bf16 %v88, %v86
    %v273 = vpack.c.bf16 %v89, %v87
    %v274 = vpack.c.bf16 %v92, %v90
    %v275 = vpack.c.bf16 %v93, %v91
    %v276 = vpack.c.bf16 %v96, %v94
    %v277 = vpack.c.bf16 %v97, %v95
    %v278 = vpack.c.bf16 %v100, %v98
    %v279 = vpack.c.bf16 %v101, %v99
    %v280 = vpack.c.bf16 %v104, %v102
    %v281 = vpack.c.bf16 %v105, %v103
    %v282 = vpack.c.bf16 %v108, %v106
    %v283 = vpack.c.bf16 %v109, %v107
    %v284 = vpack.c.bf16 %v112, %v110
    %v285 = vpack.c.bf16 %v113, %v111
    %v286 = vpack.c.bf16 %v116, %v114
    %v287 = vpack.c.bf16 %v117, %v115
    %v288 = vpack.c.bf16 %v120, %v118
    %v289 = vpack.c.bf16 %v121, %v119
    %v290 = vpack.c.bf16 %v124, %v122
    %v291 = vpack.c.bf16 %v125, %v123
    %v292 = vpack.c.bf16 %v128, %v126
    %v293 = vpack.c.bf16 %v129, %v127
    %v294 = vpack.c.bf16 %v132, %v130
    %v295 = vpack.c.bf16 %v133, %v131
    %v296 = vpack.c.bf16 %v136, %v134
    %v297 = vpack.c.bf16 %v137, %v135
    %v298 = vpack.c.bf16 %v140, %v138
    %v299 = vpack.c.bf16 %v141, %v139
    %v300 = vpack.c.bf16 %v144, %v142
    %v301 = vpack.c.bf16 %v145, %v143
    %v302 = vpack.c.bf16 %v148, %v146
    %v303 = vpack.c.bf16 %v149, %v147
    %v304 = vpack.c.bf16 %v152, %v150
    %v305 = vpack.c.bf16 %v153, %v151
    %v306 = vpack.c.bf16 %v156, %v154
    %v307 = vpack.c.bf16 %v157, %v155
    %v308 = vpack.c.bf16 %v160, %v158
    %v309 = vpack.c.bf16 %v161, %v159
    %v310 = vpack.c.bf16 %v164, %v162
    %v311 = vpack.c.bf16 %v165, %v163
    %v312 = vpack.c.bf16 %v168, %v166
    %v313 = vpack.c.bf16 %v169, %v167
    %v314 = vpack.c.bf16 %v172, %v170
    %v315 = vpack.c.bf16 %v173, %v171
    %v316 = vpack.c.bf16 %v176, %v174
    %v317 = vpack.c.bf16 %v177, %v175
    %v318 = vpack.c.bf16 %v180, %v178
    %v319 = vpack.c.bf16 %v181, %v179
    %v320 = vpack.c.bf16 %v184, %v182
    %v321 = vpack.c.bf16 %v185, %v183
    %v322 = vpack.c.bf16 %v188, %v186
    %v323 = vpack.c.bf16 %v189, %v187
    %v324 = vpack.c.bf16 %v192, %v190
    %v325 = vpack.c.bf16 %v193, %v191
    %v326 = vpack.c.bf16 %v196, %v194
    %v327 = vpack.c.bf16 %v197, %v195
    %v328 = vpack.c.bf16 %v200, %v198
    %v329 = vpack.c.bf16 %v201, %v199
    %v330 = vpack.c.bf16 %v204, %v202
    %v331 = vpack.c.bf16 %v205, %v203
    %v332 = vpack.c.bf16 %v208, %v206
    %v333 = vpack.c.bf16 %v209, %v207
    %v334 = vpack.c.bf16 %v212, %v210
    %v335 = vpack.c.bf16 %v213, %v211
    %v336 = vpack.c.bf16 %v216, %v214
    %v337 = vpack.c.bf16 %v217, %v215
    %v338 = vpack.c.bf16 %v220, %v218
    %v339 = vpack.c.bf16 %v221, %v219
    %v340 = vpack.c.bf16 %v224, %v222
    %v341 = vpack.c.bf16 %v225, %v223
    %v342 = vpack.c.bf16 %v228, %v226
    %v343 = vpack.c.bf16 %v229, %v227
    %v344 = vpack.c.bf16 %v232, %v230
    %v345 = vpack.c.bf16 %v233, %v231
    %v346 = vpack.c.bf16 %v236, %v234
    %v347 = vpack.c.bf16 %v237, %v235
    %v348 = vpack.c.bf16 %v240, %v238
    %v349 = vpack.c.bf16 %v241, %v239
    %v350 = vpack.c.bf16 %v244, %v242
    %v351 = vpack.c.bf16 %v245, %v243
    %v352 = vpack.c.bf16 %v248, %v246
    %v353 = vpack.c.bf16 %v249, %v247
    %v354 = vpack.c.bf16 %v252, %v250
    %v355 = vpack.c.bf16 %v253, %v251
    %v356 = vpack.c.bf16 %v256, %v254
    %v357 = vpack.c.bf16 %v257, %v255
    %v358 = vpack.c.bf16 %v260, %v258
    %v359 = vpack.c.bf16 %v261, %v259
    %v360 = vpack.c.bf16 %v264, %v262
    %v361 = vpack.c.bf16 %v265, %v263
    %v362 = vld [vmem:[%s3] sm:$0x3]
    %v364 = vlaneseq
    %v365 = vshrl.u32 %v364, 7
    %v366 = vsub.s32 0, %v365
    %v367 = vrot.slane %v362, %v366
    %v368 = vlaneseq
    %v369 = vshrl.u32 %v368, 7
    %v370 = vsub.s32 1, %v369
    %v371 = vrot.slane %v362, %v370
    %374 = vmatprep.subr.bf16.mxu0 %v267
    %375 = vmatpush1.bf16.msra.mxu0 %v266
    %376 = vmatprep.subr.bf16.mxu0 %v269
    %377 = vmatpush1.bf16.msra.mxu0 %v268
    %378 = vmatprep.subr.bf16.mxu0 %v271
    %379 = vmatpush1.bf16.msra.mxu0 %v270
    %380 = vmatprep.subr.bf16.mxu0 %v273
    %381 = vmatpush1.bf16.msra.mxu0 %v272
    %382 = vmatprep.subr.bf16.mxu0 %v275
    %383 = vmatpush1.bf16.msra.mxu0 %v274
    %384 = vmatprep.subr.bf16.mxu0 %v277
    %385 = vmatpush1.bf16.msra.mxu0 %v276
    %386 = vmatprep.subr.bf16.mxu0 %v279
    %387 = vmatpush1.bf16.msra.mxu0 %v278
    %388 = vmatprep.subr.bf16.mxu0 %v281
    %389 = vmatpush1.bf16.msra.mxu0 %v280
    %390 = vmatprep.subr.bf16.mxu0 %v283
    %391 = vmatpush1.bf16.msra.mxu0 %v282
    %392 = vmatprep.subr.bf16.mxu0 %v285
    %393 = vmatpush1.bf16.msra.mxu0 %v284
    %394 = vmatprep.subr.bf16.mxu0 %v287
    %395 = vmatpush1.bf16.msra.mxu0 %v286
    %396 = vmatprep.subr.bf16.mxu0 %v289
    %397 = vmatpush1.bf16.msra.mxu0 %v288
    %398 = vmatprep.subr.bf16.mxu0 %v291
    %399 = vmatpush1.bf16.msra.mxu0 %v290
    %400 = vmatprep.subr.bf16.mxu0 %v293
    %401 = vmatpush1.bf16.msra.mxu0 %v292
    %402 = vmatprep.subr.bf16.mxu0 %v295
    %403 = vmatpush1.bf16.msra.mxu0 %v294
    %404 = vmatprep.subr.bf16.mxu0 %v297
    %405 = vmatpush1.bf16.msra.mxu0 %v296
    %406 = vmatprep.mubr.bf16.mxu0 %v69
    %407 = vmatmul.mubr.bf16.gmra.mrb[0].mxu0 %v68
    %v408 = vpop.f32.mrb[0].mxu0
    %v409 = vadd.f32 %v367, %v408
    %v410 = vpop.f32.mrb[0].mxu0
    %v411 = vadd.f32 %v371, %v410
    %v412 = vpop.f32.mrb[0].mxu0
    %v413 = vpop.f32.mrb[0].mxu0
    %414 = vdwg.mxu0
    %415 = vmatprep.subr.bf16.mxu0 %v299
    %416 = vmatpush1.bf16.msra.mxu0 %v298
    %417 = vmatprep.subr.bf16.mxu0 %v301
    %418 = vmatpush1.bf16.msra.mxu0 %v300
    %419 = vmatprep.subr.bf16.mxu0 %v303
    %420 = vmatpush1.bf16.msra.mxu0 %v302
    %421 = vmatprep.subr.bf16.mxu0 %v305
    %422 = vmatpush1.bf16.msra.mxu0 %v304
    %423 = vmatprep.subr.bf16.mxu0 %v307
    %424 = vmatpush1.bf16.msra.mxu0 %v306
    %425 = vmatprep.subr.bf16.mxu0 %v309
    %426 = vmatpush1.bf16.msra.mxu0 %v308
    %427 = vmatprep.subr.bf16.mxu0 %v311
    %428 = vmatpush1.bf16.msra.mxu0 %v310
    %429 = vmatprep.subr.bf16.mxu0 %v313
    %430 = vmatpush1.bf16.msra.mxu0 %v312
    %431 = vmatprep.subr.bf16.mxu0 %v315
    %432 = vmatpush1.bf16.msra.mxu0 %v314
    %433 = vmatprep.subr.bf16.mxu0 %v317
    %434 = vmatpush1.bf16.msra.mxu0 %v316
    %435 = vmatprep.subr.bf16.mxu0 %v319
    %436 = vmatpush1.bf16.msra.mxu0 %v318
    %437 = vmatprep.subr.bf16.mxu0 %v321
    %438 = vmatpush1.bf16.msra.mxu0 %v320
    %439 = vmatprep.subr.bf16.mxu0 %v323
    %440 = vmatpush1.bf16.msra.mxu0 %v322
    %441 = vmatprep.subr.bf16.mxu0 %v325
    %442 = vmatpush1.bf16.msra.mxu0 %v324
    %443 = vmatprep.subr.bf16.mxu0 %v327
    %444 = vmatpush1.bf16.msra.mxu0 %v326
    %445 = vmatprep.subr.bf16.mxu0 %v329
    %446 = vmatpush1.bf16.msra.mxu0 %v328
    %447 = vmatprep.mubr.bf16.mxu0 %v71
    %448 = vmatmul.mubr.bf16.gmra.mrb[0].mxu0 %v70
    %v449 = vpop.f32.mrb[0].mxu0
    %v450 = vadd.f32 %v409, %v449
    %v451 = vpop.f32.mrb[0].mxu0
    %v452 = vadd.f32 %v411, %v451
    %v453 = vpop.f32.mrb[0].mxu0
    %v454 = vpop.f32.mrb[0].mxu0
    %455 = vdwg.mxu0
    %456 = vmatprep.subr.bf16.mxu0 %v331
    %457 = vmatpush1.bf16.msra.mxu0 %v330
    %458 = vmatprep.subr.bf16.mxu0 %v333
    %459 = vmatpush1.bf16.msra.mxu0 %v332
    %460 = vmatprep.subr.bf16.mxu0 %v335
    %461 = vmatpush1.bf16.msra.mxu0 %v334
    %462 = vmatprep.subr.bf16.mxu0 %v337
    %463 = vmatpush1.bf16.msra.mxu0 %v336
    %464 = vmatprep.subr.bf16.mxu0 %v339
    %465 = vmatpush1.bf16.msra.mxu0 %v338
    %466 = vmatprep.subr.bf16.mxu0 %v341
    %467 = vmatpush1.bf16.msra.mxu0 %v340
    %468 = vmatprep.subr.bf16.mxu0 %v343
    %469 = vmatpush1.bf16.msra.mxu0 %v342
    %470 = vmatprep.subr.bf16.mxu0 %v345
    %471 = vmatpush1.bf16.msra.mxu0 %v344
    %472 = vmatprep.subr.bf16.mxu0 %v347
    %473 = vmatpush1.bf16.msra.mxu0 %v346
    %474 = vmatprep.subr.bf16.mxu0 %v349
    %475 = vmatpush1.bf16.msra.mxu0 %v348
    %476 = vmatprep.subr.bf16.mxu0 %v351
    %477 = vmatpush1.bf16.msra.mxu0 %v350
    %478 = vmatprep.subr.bf16.mxu0 %v353
    %479 = vmatpush1.bf16.msra.mxu0 %v352
    %480 = vmatprep.subr.bf16.mxu0 %v355
    %481 = vmatpush1.bf16.msra.mxu0 %v354
    %482 = vmatprep.subr.bf16.mxu0 %v357
    %483 = vmatpush1.bf16.msra.mxu0 %v356
    %484 = vmatprep.subr.bf16.mxu0 %v359
    %485 = vmatpush1.bf16.msra.mxu0 %v358
    %486 = vmatprep.subr.bf16.mxu0 %v361
    %487 = vmatpush1.bf16.msra.mxu0 %v360
    %488 = vmatprep.mubr.bf16.mxu0 %v73
    %489 = vmatmul.mubr.bf16.gmra.mrb[0].mxu0 %v72
    %v490 = vpop.f32.mrb[0].mxu0
    %v491 = vadd.f32 %v450, %v490
    %v492 = vpop.f32.mrb[0].mxu0
    %v493 = vadd.f32 %v452, %v492
    %v494 = vpop.f32.mrb[0].mxu0
    %v495 = vpop.f32.mrb[0].mxu0
    %496 = vdwg.mxu0
    %v497 = vmax.f32 %v491, 0.0
    %v498 = vmax.f32 %v493, 0.0
    %v499 = vld [vmem:[#allocation9] sm:$0xff]
    %v500 = vld [vmem:[#allocation9 + $0x8] sm:$0xff]
    %v501 = vld [vmem:[#allocation9 + $0x10] sm:$0xff]
    %v502 = vld [vmem:[#allocation9 + $0x18] sm:$0xff]
    %v503 = vld [vmem:[#allocation9 + $0x20] sm:$0xff]
    %v504 = vld [vmem:[#allocation9 + $0x28] sm:$0xff]
    %v505 = vld [vmem:[#allocation9 + $0x30] sm:$0xff]
    %v506 = vld [vmem:[#allocation9 + $0x38] sm:$0xff]
    %v507 = vld [vmem:[#allocation9 + $0x40] sm:$0xff]
    %v508 = vld [vmem:[#allocation9 + $0x48] sm:$0xff]
    %v509 = vld [vmem:[#allocation9 + $0x50] sm:$0xff]
    %v510 = vld [vmem:[#allocation9 + $0x58] sm:$0xff]
    %v511 = vld [vmem:[#allocation9 + $0x60] sm:$0xff]
    %v512 = vld [vmem:[#allocation9 + $0x68] sm:$0xff]
    %v513 = vld [vmem:[#allocation9 + $0x70] sm:$0xff]
    %v514 = vld [vmem:[#allocation9 + $0x78] sm:$0xff]
    %v515 = vld [vmem:[#allocation9 + $0x80] sm:$0xff]
    %v516 = vld [vmem:[#allocation9 + $0x88] sm:$0xff]
    %v517 = vld [vmem:[#allocation9 + $0x90] sm:$0xff]
    %v518 = vld [vmem:[#allocation9 + $0x98] sm:$0xff]
    %v519 = vld [vmem:[#allocation9 + $0xa0] sm:$0xff]
    %v520 = vld [vmem:[#allocation9 + $0xa8] sm:$0xff]
    %v521 = vld [vmem:[#allocation9 + $0xb0] sm:$0xff]
    %v522 = vld [vmem:[#allocation9 + $0xb8] sm:$0xff]
    %v523 = vld [vmem:[#allocation9 + $0xc0] sm:$0xff]
    %v524 = vld [vmem:[#allocation9 + $0xc8] sm:$0xff]
    %v525 = vld [vmem:[#allocation9 + $0xd0] sm:$0xff]
    %v526 = vld [vmem:[#allocation9 + $0xd8] sm:$0xff]
    %v527 = vld [vmem:[#allocation9 + $0xe0] sm:$0xff]
    %v528 = vld [vmem:[#allocation9 + $0xe8] sm:$0xff]
    %v529 = vld [vmem:[#allocation9 + $0xf0] sm:$0xff]
    %v530 = vld [vmem:[#allocation9 + $0xf8] sm:$0xff]
    %v531 = vld [vmem:[%s5] sm:$0x1]
    %v533 = vlaneseq
    %v534 = vshrl.u32 %v533, 7
    %v535 = vsub.s32 0, %v534
    %v536 = vrot.slane %v531, %v535
    %538 = vmatprep.subr.mxu0 0.0
    %539 = vmatpush1.msra.mxu0 %v499
    %540 = vmatprep.subr.mxu0 0.0
    %541 = vmatpush1.msra.mxu0 %v500
    %542 = vmatprep.subr.mxu0 0.0
    %543 = vmatpush1.msra.mxu0 %v501
    %544 = vmatprep.subr.mxu0 0.0
    %545 = vmatpush1.msra.mxu0 %v502
    %546 = vmatprep.subr.mxu0 0.0
    %547 = vmatpush1.msra.mxu0 %v503
    %548 = vmatprep.subr.mxu0 0.0
    %549 = vmatpush1.msra.mxu0 %v504
    %550 = vmatprep.subr.mxu0 0.0
    %551 = vmatpush1.msra.mxu0 %v505
    %552 = vmatprep.subr.mxu0 0.0
    %553 = vmatpush1.msra.mxu0 %v506
    %554 = vmatprep.subr.mxu0 0.0
    %555 = vmatpush1.msra.mxu0 %v507
    %556 = vmatprep.subr.mxu0 0.0
    %557 = vmatpush1.msra.mxu0 %v508
    %558 = vmatprep.subr.mxu0 0.0
    %559 = vmatpush1.msra.mxu0 %v509
    %560 = vmatprep.subr.mxu0 0.0
    %561 = vmatpush1.msra.mxu0 %v510
    %562 = vmatprep.subr.mxu0 0.0
    %563 = vmatpush1.msra.mxu0 %v511
    %564 = vmatprep.subr.mxu0 0.0
    %565 = vmatpush1.msra.mxu0 %v512
    %566 = vmatprep.subr.mxu0 0.0
    %567 = vmatpush1.msra.mxu0 %v513
    %568 = vmatprep.subr.mxu0 0.0
    %569 = vmatpush1.msra.mxu0 %v514
    %570 = vmatprep.subr.mxu0 0.0
    %571 = vmatpush1.msra.mxu0 %v515
    %572 = vmatprep.subr.mxu0 0.0
    %573 = vmatpush1.msra.mxu0 %v516
    %574 = vmatprep.subr.mxu0 0.0
    %575 = vmatpush1.msra.mxu0 %v517
    %576 = vmatprep.subr.mxu0 0.0
    %577 = vmatpush1.msra.mxu0 %v518
    %578 = vmatprep.subr.mxu0 0.0
    %579 = vmatpush1.msra.mxu0 %v519
    %580 = vmatprep.subr.mxu0 0.0
    %581 = vmatpush1.msra.mxu0 %v520
    %582 = vmatprep.subr.mxu0 0.0
    %583 = vmatpush1.msra.mxu0 %v521
    %584 = vmatprep.subr.mxu0 0.0
    %585 = vmatpush1.msra.mxu0 %v522
    %586 = vmatprep.subr.mxu0 0.0
    %587 = vmatpush1.msra.mxu0 %v523
    %588 = vmatprep.subr.mxu0 0.0
    %589 = vmatpush1.msra.mxu0 %v524
    %590 = vmatprep.subr.mxu0 0.0
    %591 = vmatpush1.msra.mxu0 %v525
    %592 = vmatprep.subr.mxu0 0.0
    %593 = vmatpush1.msra.mxu0 %v526
    %594 = vmatprep.subr.mxu0 0.0
    %595 = vmatpush1.msra.mxu0 %v527
    %596 = vmatprep.subr.mxu0 0.0
    %597 = vmatpush1.msra.mxu0 %v528
    %598 = vmatprep.subr.mxu0 0.0
    %599 = vmatpush1.msra.mxu0 %v529
    %600 = vmatprep.subr.mxu0 0.0
    %601 = vmatpush1.msra.mxu0 %v530
    %602 = vmatprep.mubr.f32.mxu0 %v498
    %603 = vmatmul.mubr.f32.gmra.mrb[0].mxu0 %v497
    %v604 = vpop.f32.mrb[0].mxu0
    %v605 = vadd.f32 %v536, %v604
    %v606 = vpop.f32.mrb[0].mxu0
    %607 = vdwg.mxu0
    %s608 = smul.u32 0, 8
    %s609 = sld [smem:[#allocation3]]
    %v610 = vlaneseq
    %v611 = vshrl.u32 %v610, 7
    %v612 = vlaneseq
    %v613 = vand.u32 %v612, 127
    %v614 = vstv %s608
    %v615 = vadd.s32 %v611, %v614
    %v616 = vmul.u32 %v615, 2654435761
    %v617 = vmul.u32 %v613, 2246822507
    %v618 = vadd.s32 %v616, %v617
    %v619 = vstv %s609
    %v620 = vadd.s32 %v618, %v619
    %v621 = vshrl.u32 %v620, 16
    %v622 = vxor.u32 %v620, %v621
    %v623 = vmul.u32 %v622, 2146121005
    %v624 = vshrl.u32 %v623, 15
    %v625 = vxor.u32 %v623, %v624
    %v626 = vmul.u32 %v625, 2221713035
    %v627 = vshrl.u32 %v626, 16
    %v628 = vxor.u32 %v626, %v627
    %v629 = vand.u32 %v628, 1
    %vm630 = vcmp.eq.s32.totalorder %v629, 0
    %v631 = vmul.f32 %v605, 2.0
    %v632 = vsel %vm630, %v631, 0.0
    %633 = vst [vmem:[#allocation10] sm:$0xff] %v632
    // Predicated region
    $region34: #{tpu_custom_call.1} parent=1 // pred_check
      _
    $region35: #{tpu_custom_call.1} parent=1 // pred_check_branch
      %635 = sbr.rel (0) target = $region37
    $region36: #{tpu_custom_call.1} parent=1 // pred_region
      %s637 = ssub.s32 128, 128
      %638 = vsyncadd [#allocation6], %s637
      %s640 = sshll.u32 [#allocation10], 4
      %s641 = int_to_ptr.vmem [resolvable:$true] %s640
      %643 = dma.vmem_to_hbm [thread:$0]  %s641, 128, %s6, [#allocation6]
    $region37: #{tpu_custom_call.1} parent=1 // pred_fallthru
      _
    // Predicated region
    $region38: #{tpu_custom_call.1} parent=1 // pred_check
      _
    $region39: #{tpu_custom_call.1} parent=1 // pred_check_branch
      %645 = sbr.rel (0) target = $region41
    $region40: #{tpu_custom_call.1} parent=1 // pred_region
      %646 = dma.done [#allocation6], 128
    $region41: #{tpu_custom_call.1} parent=1 // pred_fallthru
      _
    %647 = vsyncpa [#allocation5], 1
    %648 = vsyncpa [#allocation8], 1
    %649 = vsyncpa [#allocation6], 1

</llo_original>
